<compile_context>
chip_gen: v7x
topology: tpu7x:2x2x1
jax: 0.10.0
libtpu: 0.0.40
codegen_flags: <defaults>
</compile_context>

<pallas_src>
import functools

import numpy as np
import jax
import jax.numpy as jnp
from jax import lax
from jax.experimental import pallas as pl
from jax.experimental.pallas import tpu as pltpu


# --------------------------- model configuration ---------------------------

CFG = dict(
    input_width=16, input_height=16, input_channels=4,
    conv2d_channels=(8, 16), kernel_sizes=(3, 3), strides=(1, 1),
    paddings=(0, 0), pooling_kernels=(2, 2), pooling_strides=(2, 2),
    hidden_sizes=(32,), n_out=2,
)
# TODO(synk): only stride-1 / pad-0 convs, 2x2/2 avg pooling and a single FC
# hidden layer are implemented (this concrete configuration of the parametric
# module); the torch.randn shape probe for _to_linear is replaced by static
# shape arithmetic below.


def conv_stack_shapes(cfg):
    """Static replacement for the torch.randn shape probe used for _to_linear."""
    h, w, c = cfg["input_height"], cfg["input_width"], cfg["input_channels"]
    shapes = []
    for li, cout in enumerate(cfg["conv2d_channels"]):
        k = cfg["kernel_sizes"][li]
        ho, wo = h - k + 1, w - k + 1                      # conv, pad=0, stride=1
        hp, wp = ho // 2, wo // 2                          # avg-pool 2/2, floor
        shapes.append(dict(cin=c, cout=cout, k=k, h_in=h, w_in=w,
                           ho=ho, wo=wo, hp=hp, wp=wp))
        h, w, c = hp, wp, cout
    return shapes, c * h * w


def make_plan(cfg, shapes, batch):
    """Row geometry of the batch-stacked blocks flowing through the kernel."""
    s1, s2 = shapes
    H = cfg["input_height"]
    # Batch folding along sublanes needs sample bases 2-aligned at each pool.
    assert H % 4 == 0, "batched row stacking requires input_height % 4 == 0"
    lz1 = batch * H - s1["k"] + 1          # conv1 output rows (valid + garbage)
    lr1 = lz1 // 2                         # after row-pool 1
    lz2 = lr1 - s2["k"] + 1                # conv2 output rows
    lr2 = lz2 // 2                         # after row-pool 2
    lh = lr2 - s2["hp"] + 1                # FC1 (banded over Hp2) output rows
    h_base = [(n * H) // 4 for n in range(batch)]   # valid FC row per sample
    assert h_base[-1] + 1 <= lh
    return dict(N=batch, H=H, K1=s1["k"], K2=s2["k"], Hp2=s2["hp"],
                WC0=s1["w_in"] * s1["cin"],
                WoC1=s1["wo"] * s1["cout"],
                WoC2=s2["wo"] * s2["cout"],
                H1=cfg["hidden_sizes"][0], NOUT=cfg["n_out"],
                Lz1=lz1, Lr1=lr1, Lz2=lz2, Lr2=lr2, Lh=lh, h_base=h_base)


# ------------------------------ Pallas kernel -------------------------------

def fused_cnn_kernel(x_ref, w_ref, o_ref, *, offs, K1, K2, Hp2,
                     WC0, WoC1, WoC2, Lz1, Lz2, Lh):
    """Whole CNNClassifierModel forward, all samples at once, VMEM/vreg resident.

    x_ref : (N*H, W*C0)  input rows, channels-minor along width, batch stacked
                         along the sublane axis
    w_ref : (R, 128)     every re-laid weight / bias / pool / select matrix
                         packed into one buffer (static row offsets in `offs`)
    o_ref : (N, n_out)   log-probabilities
    """
    dotf = functools.partial(jnp.dot, preferred_element_type=jnp.float32)

    def rd(name):                       # whole packed block
        off, r, c = offs[name]
        return w_ref[off:off + r, 0:c]

    def rdp(name, plane, rows):         # one kh / row plane of a 3-D weight
        off, _, c = offs[name]
        base = off + plane * rows
        return w_ref[base:base + rows, 0:c]

    # conv1 + bias + ReLU: banded over kh; input channels folded into the
    # contraction (K = W*C0); batch folded into M.  Rows between samples are
    # garbage and are never consumed by valid windows downstream.
    z1 = dotf(x_ref[0:Lz1, :], rdp("w1", 0, WC0))
    for kh in range(1, K1):
        z1 = z1 + dotf(x_ref[kh:kh + Lz1, :], rdp("w1", kh, WC0))
    z1 = jnp.maximum(z1 + rd("b1"), 0.0)

    # avg-pool 2x2, row half: left matmul on the (mostly idle) MXU; the column
    # half and the 1/4 factor are folded into the conv2 weights.
    r1 = dotf(rd("p1"), z1)                                 # (Lr1, Wo1*C1)

    # conv2 + bias + ReLU: banded over kh, K = Wo1*C1 (pool folded in).
    z2 = dotf(r1[0:Lz2, :], rdp("w2", 0, WoC1))
    for kh in range(1, K2):
        z2 = z2 + dotf(r1[kh:kh + Lz2, :], rdp("w2", kh, WoC1))
    z2 = jnp.maximum(z2 + rd("b2"), 0.0)

    r2 = dotf(rd("p2"), z2)                                 # (Lr2, Wo2*C2)

    # FC1 as a banded matmul over the Hp2 pooled rows (pool-column half and the
    # PyTorch NCHW flatten order are folded into the weights).
    h = dotf(r2[0:Lh, :], rdp("fc1", 0, WoC2))
    for r in range(1, Hp2):
        h = h + dotf(r2[r:r + Lh, :], rdp("fc1", r, WoC2))
    h = jnp.maximum(h + rd("fc1b"), 0.0)                    # (Lh, H1)

    # Select the N valid rows (one per sample), FC2, log_softmax, single store.
    hsel = dotf(rd("sel"), h)                               # (N, H1)
    logits = dotf(hsel, rd("fc2w")) + rd("fc2b")            # (N, n_out)
    m = jnp.max(logits, axis=-1, keepdims=True)
    z = logits - m
    o_ref[...] = z - jnp.log(jnp.sum(jnp.exp(z), axis=-1, keepdims=True))


# --------------------- one-time parameter preparation -----------------------

def _band_matrix(k, w_in, wo):
    """E[kw, j+kw, j] = 1: expands a kernel into a banded (width) matmul."""
    e = np.zeros((k, w_in, wo), np.float32)
    for kw in range(k):
        for j in range(wo):
            e[kw, j + kw, j] = 1.0
    return e


def _colpool_matrix(wo, wp, c):
    """Pairs adjacent width chunks of C lanes and scales by 0.25 (floor mode)."""
    s = np.zeros((wo * c, wp * c), np.float32)
    for j in range(wp):
        for d in range(2):
            for ch in range(c):
                s[(2 * j + d) * c + ch, j * c + ch] = 0.25
    return s


def _rowpool_matrix(n_out_rows, n_in_rows):
    """P[t, 2t] = P[t, 2t+1] = 1: row half of the 2x2 average pool."""
    p = np.zeros((n_out_rows, n_in_rows), np.float32)
    for t in range(n_out_rows):
        p[t, 2 * t] = 1.0
        p[t, 2 * t + 1] = 1.0
    return p


def _pack(named_arrays, lanes=128):
    """Pack 2-D f32 arrays into one (rows, 128) buffer, 8-row-aligned blocks."""
    offs, blocks, row = {}, [], 0
    for name, a in named_arrays:
        a = np.asarray(a, np.float32)
        r, c = a.shape
        assert c <= lanes
        rp = -(-r // 8) * 8
        blk = np.zeros((rp, lanes), np.float32)
        blk[:r, :c] = a
        offs[name] = (row, r, c)
        blocks.append(blk)
        row += rp
    return jnp.asarray(np.concatenate(blocks, axis=0)), offs


def prepare_kernel_params(params, cfg, shapes, plan):
    """One-time host-side weight re-layout + packing (numpy)."""
    s1, s2 = shapes
    hidden = cfg["hidden_sizes"][0]

    c0w = np.asarray(params["conv0_w"], np.float32)       # (kh, kw, cin, cout)
    c1w = np.asarray(params["conv1_w"], np.float32)

    # conv1: banded over output width, channels-minor rows -> (K1, W*C0, Wo1*C1)
    e1 = _band_matrix(s1["k"], s1["w_in"], s1["wo"])
    w1 = np.einsum("kpj,hkco->hpcjo", e1, c0w).reshape(
        s1["k"], s1["w_in"] * s1["cin"], s1["wo"] * s1["cout"])

    # conv2: banded, then fold layer-1 column pool -> (K2, Wo1*C1, Wo2*C2)
    e2 = _band_matrix(s2["k"], s2["w_in"], s2["wo"])
    w2 = np.einsum("kpj,hkco->hpcjo", e2, c1w).reshape(
        s2["k"], s2["w_in"] * s2["cin"], s2["wo"] * s2["cout"])
    s1p = _colpool_matrix(s1["wo"], s1["wp"], s1["cout"])
    w2 = np.einsum("pc,kco->kpo", s1p, w2)                 # (K2, Wo1*C1, Wo2*C2)

    # FC1: fold NCHW flatten order, then layer-2 column pool -> (Hp2, Wo2*C2, H1)
    hp2, wp2, c2 = s2["hp"], s2["wp"], s2["cout"]
    fc1 = np.asarray(params["fc1_w"], np.float32).reshape(c2, hp2, wp2, hidden)
    fc1 = np.transpose(fc1, (1, 2, 0, 3)).reshape(hp2, wp2 * c2, hidden)
    s2p = _colpool_matrix(s2["wo"], s2["wp"], s2["cout"])
    fc1 = np.einsum("pc,rco->rpo", s2p, fc1)               # (Hp2, Wo2*C2, H1)

    b1 = np.tile(np.asarray(params["conv0_b"], np.float32).reshape(1, s1["cout"]),
                 (1, s1["wo"]))
    b2 = np.tile(np.asarray(params["conv1_b"], np.float32).reshape(1, s2["cout"]),
                 (1, s2["wo"]))

    # Batch-geometry row-pool / row-select matrices for the stacked blocks.
    p1 = _rowpool_matrix(plan["Lr1"], plan["Lz1"])
    p2 = _rowpool_matrix(plan["Lr2"], plan["Lz2"])
    sel = np.zeros((plan["N"], plan["Lh"]), np.float32)
    for n, base in enumerate(plan["h_base"]):
        sel[n, base] = 1.0

    wpack, offs = _pack([
        ("w1", w1.reshape(-1, w1.shape[-1])),
        ("w2", w2.reshape(-1, w2.shape[-1])),
        ("fc1", fc1.reshape(-1, fc1.shape[-1])),
        ("p1", p1), ("p2", p2), ("sel", sel),
        ("b1", b1), ("b2", b2),
        ("fc1b", np.asarray(params["fc1_b"], np.float32)),
        ("fc2w", np.asarray(params["fc2_w"], np.float32)),
        ("fc2b", np.asarray(params["fc2_b"], np.float32)),
    ])
    return dict(wpack=wpack, offsets=offs)


# --------------------------------- wrapper ----------------------------------

def make_forward(cfg, plan, offs):
    """Build a jitted forward: NCHW input -> dict(output=log_probs)."""
    H, W, C0 = cfg["input_height"], cfg["input_width"], cfg["input_channels"]
    N, n_out = plan["N"], cfg["n_out"]

    kernel = functools.partial(
        fused_cnn_kernel, offs=offs,
        K1=plan["K1"], K2=plan["K2"], Hp2=plan["Hp2"],
        WC0=plan["WC0"], WoC1=plan["WoC1"], WoC2=plan["WoC2"],
        Lz1=plan["Lz1"], Lz2=plan["Lz2"], Lh=plan["Lh"])

    vmem = pl.BlockSpec(memory_space=pltpu.MemorySpace.VMEM)
    call = pl.pallas_call(
        kernel,
        out_shape=jax.ShapeDtypeStruct((N, n_out), jnp.float32),
        in_specs=[vmem, vmem],          # 2 inputs -> 2 HBM->VMEM DMAs total
        out_specs=vmem,
    )

    @jax.jit
    def forward(x_nchw, wpack):
        # channels-minor-along-width rows, batch stacked along sublanes (~8 KB).
        x2d = jnp.transpose(x_nchw, (0, 2, 3, 1)).reshape(N * H, W * C0)
        return dict(output=call(x2d, wpack))

    return forward


# --------------------------- parameter initialization ------------------------

def init_params(cfg, shapes, to_linear, key):
    params = {}
    keys = iter(jax.random.split(key, 4 * len(shapes) + 4))

    def unif(k, shape, fan_in):
        bound = 1.0 / np.sqrt(fan_in)
        return jax.random.uniform(k, shape, jnp.float32, -bound, bound)

    for i, s in enumerate(shapes):
        fan_in = s["cin"] * s["k"] * s["k"]
        params[f"conv{i}_w"] = unif(next(keys), (s["k"], s["k"], s["cin"], s["cout"]), fan_in)
        params[f"conv{i}_b"] = unif(next(keys), (1, s["cout"]), fan_in)

    h1 = cfg["hidden_sizes"][0]
    params["fc1_w"] = unif(next(keys), (to_linear, h1), to_linear)
    params["fc1_b"] = unif(next(keys), (1, h1), to_linear)
    params["fc2_w"] = unif(next(keys), (h1, cfg["n_out"]), h1)
    params["fc2_b"] = unif(next(keys), (1, cfg["n_out"]), h1)
    return params


# --------------------------- pure-JAX reference ------------------------------

def reference_forward(params, x_nchw, shapes):
    x = x_nchw
    for i in range(len(shapes)):
        w_oihw = jnp.transpose(params[f"conv{i}_w"], (3, 2, 0, 1))
        x = lax.conv_general_dilated(x, w_oihw, (1, 1), "VALID",
                                     dimension_numbers=("NCHW", "OIHW", "NCHW"))
        x = x + params[f"conv{i}_b"].reshape(1, -1, 1, 1)
        x = jnp.maximum(x, 0.0)
        x = lax.reduce_window(x, 0.0, lax.add, (1, 1, 2, 2), (1, 1, 2, 2), "VALID") / 4.0
    x = x.reshape(x.shape[0], -1)
    x = jnp.maximum(x @ params["fc1_w"] + params["fc1_b"], 0.0)
    logits = x @ params["fc2_w"] + params["fc2_b"]
    return jax.nn.log_softmax(logits, axis=-1)


# ----------------------------------- main ------------------------------------

if __name__ == "__main__":
    root = jax.random.PRNGKey(0)
    key_params, key_x = jax.random.split(root)

    shapes, to_linear = conv_stack_shapes(CFG)
    params = init_params(CFG, shapes, to_linear, key_params)

    N = 2
    plan = make_plan(CFG, shapes, N)
    kparams = prepare_kernel_params(params, CFG, shapes, plan)   # one-time prep
    forward = make_forward(CFG, plan, kparams["offsets"])

    x = jax.random.normal(key_x, (N, CFG["input_channels"],
                                  CFG["input_height"], CFG["input_width"]),
                          dtype=jnp.float32)

    result = forward(x, kparams["wpack"])
    out = jax.block_until_ready(result["output"])
    assert out.shape == (N, CFG["n_out"]) and out.dtype == jnp.float32

    ref = jax.block_until_ready(reference_forward(params, x, shapes))
    np.testing.assert_allclose(np.asarray(out), np.asarray(ref), rtol=1e-4, atol=1e-4)

    print("KERNEL_OK")
</pallas_src>

<mosaic_0001>
module attributes {stable_mosaic.version = 11 : i64} {
  func.func @fused_cnn_kernel(%arg0: memref<32x64xf32, #tpu.memory_space<vmem>>, %arg1: memref<784x128xf32, #tpu.memory_space<vmem>>, %arg2: memref<2x2xf32, #tpu.memory_space<vmem>>) attributes {dimension_semantics = [], scalar_prefetch = 0 : i64, scratch_operands = 0 : i64, tpu.core_type = #tpu.core_type<tc>} {
    %c0 = arith.constant 0 : index
    %c0_0 = arith.constant 0 : index
    %0 = vector.load %arg0[%c0, %c0_0] : memref<32x64xf32, #tpu.memory_space<vmem>>, vector<30x64xf32>
    %c0_1 = arith.constant 0 : index
    %c0_2 = arith.constant 0 : index
    %1 = vector.load %arg1[%c0_1, %c0_2] : memref<784x128xf32, #tpu.memory_space<vmem>>, vector<64x112xf32>
    %cst = arith.constant dense<0.000000e+00> : vector<30x112xf32>
    %2 = tpu.matmul %0, %1, %cst {dimension_numbers = #tpu.dot_dimension_numbers<[1], [0], [0], [1], [0, 0, 1, 1], [], []>} : vector<30x64xf32>, vector<64x112xf32>, vector<30x112xf32> -> vector<30x112xf32>
    %c1 = arith.constant 1 : index
    %c0_3 = arith.constant 0 : index
    %3 = vector.load %arg0[%c1, %c0_3] : memref<32x64xf32, #tpu.memory_space<vmem>>, vector<30x64xf32>
    %c64 = arith.constant 64 : index
    %c0_4 = arith.constant 0 : index
    %4 = vector.load %arg1[%c64, %c0_4] : memref<784x128xf32, #tpu.memory_space<vmem>>, vector<64x112xf32>
    %cst_5 = arith.constant dense<0.000000e+00> : vector<30x112xf32>
    %5 = tpu.matmul %3, %4, %cst_5 {dimension_numbers = #tpu.dot_dimension_numbers<[1], [0], [0], [1], [0, 0, 1, 1], [], []>} : vector<30x64xf32>, vector<64x112xf32>, vector<30x112xf32> -> vector<30x112xf32>
    %6 = arith.addf %2, %5 : vector<30x112xf32>
    %c2 = arith.constant 2 : index
    %c0_6 = arith.constant 0 : index
    %7 = vector.load %arg0[%c2, %c0_6] : memref<32x64xf32, #tpu.memory_space<vmem>>, vector<30x64xf32>
    %c128 = arith.constant 128 : index
    %c0_7 = arith.constant 0 : index
    %8 = vector.load %arg1[%c128, %c0_7] : memref<784x128xf32, #tpu.memory_space<vmem>>, vector<64x112xf32>
    %cst_8 = arith.constant dense<0.000000e+00> : vector<30x112xf32>
    %9 = tpu.matmul %7, %8, %cst_8 {dimension_numbers = #tpu.dot_dimension_numbers<[1], [0], [0], [1], [0, 0, 1, 1], [], []>} : vector<30x64xf32>, vector<64x112xf32>, vector<30x112xf32> -> vector<30x112xf32>
    %10 = arith.addf %6, %9 : vector<30x112xf32>
    %c720 = arith.constant 720 : index
    %c0_9 = arith.constant 0 : index
    %11 = vector.load %arg1[%c720, %c0_9] : memref<784x128xf32, #tpu.memory_space<vmem>>, vector<1x112xf32>
    %12 = vector.broadcast %11 : vector<1x112xf32> to vector<30x112xf32>
    %13 = arith.addf %10, %12 : vector<30x112xf32>
    %cst_10 = arith.constant 0.000000e+00 : f32
    %14 = vector.broadcast %cst_10 : f32 to vector<30x112xf32>
    %15 = arith.maximumf %13, %14 : vector<30x112xf32>
    %c688 = arith.constant 688 : index
    %c0_11 = arith.constant 0 : index
    %16 = vector.load %arg1[%c688, %c0_11] : memref<784x128xf32, #tpu.memory_space<vmem>>, vector<15x30xf32>
    %cst_12 = arith.constant dense<0.000000e+00> : vector<15x112xf32>
    %17 = tpu.matmul %16, %15, %cst_12 {dimension_numbers = #tpu.dot_dimension_numbers<[1], [0], [0], [1], [0, 0, 1, 1], [], []>} : vector<15x30xf32>, vector<30x112xf32>, vector<15x112xf32> -> vector<15x112xf32>
    %18 = vector.extract_strided_slice %17 {offsets = [0, 0], sizes = [13, 112], strides = [1, 1]} : vector<15x112xf32> to vector<13x112xf32>
    %c192 = arith.constant 192 : index
    %c0_13 = arith.constant 0 : index
    %19 = vector.load %arg1[%c192, %c0_13] : memref<784x128xf32, #tpu.memory_space<vmem>>, vector<112x80xf32>
    %cst_14 = arith.constant dense<0.000000e+00> : vector<13x80xf32>
    %20 = tpu.matmul %18, %19, %cst_14 {dimension_numbers = #tpu.dot_dimension_numbers<[1], [0], [0], [1], [0, 0, 1, 1], [], []>} : vector<13x112xf32>, vector<112x80xf32>, vector<13x80xf32> -> vector<13x80xf32>
    %21 = vector.extract_strided_slice %17 {offsets = [1, 0], sizes = [13, 112], strides = [1, 1]} : vector<15x112xf32> to vector<13x112xf32>
    %c304 = arith.constant 304 : index
    %c0_15 = arith.constant 0 : index
    %22 = vector.load %arg1[%c304, %c0_15] : memref<784x128xf32, #tpu.memory_space<vmem>>, vector<112x80xf32>
    %cst_16 = arith.constant dense<0.000000e+00> : vector<13x80xf32>
    %23 = tpu.matmul %21, %22, %cst_16 {dimension_numbers = #tpu.dot_dimension_numbers<[1], [0], [0], [1], [0, 0, 1, 1], [], []>} : vector<13x112xf32>, vector<112x80xf32>, vector<13x80xf32> -> vector<13x80xf32>
    %24 = arith.addf %20, %23 : vector<13x80xf32>
    %25 = vector.extract_strided_slice %17 {offsets = [2, 0], sizes = [13, 112], strides = [1, 1]} : vector<15x112xf32> to vector<13x112xf32>
    %c416 = arith.constant 416 : index
    %c0_17 = arith.constant 0 : index
    %26 = vector.load %arg1[%c416, %c0_17] : memref<784x128xf32, #tpu.memory_space<vmem>>, vector<112x80xf32>
    %cst_18 = arith.constant dense<0.000000e+00> : vector<13x80xf32>
    %27 = tpu.matmul %25, %26, %cst_18 {dimension_numbers = #tpu.dot_dimension_numbers<[1], [0], [0], [1], [0, 0, 1, 1], [], []>} : vector<13x112xf32>, vector<112x80xf32>, vector<13x80xf32> -> vector<13x80xf32>
    %28 = arith.addf %24, %27 : vector<13x80xf32>
    %c728 = arith.constant 728 : index
    %c0_19 = arith.constant 0 : index
    %29 = vector.load %arg1[%c728, %c0_19] : memref<784x128xf32, #tpu.memory_space<vmem>>, vector<1x80xf32>
    %30 = vector.broadcast %29 : vector<1x80xf32> to vector<13x80xf32>
    %31 = arith.addf %28, %30 : vector<13x80xf32>
    %cst_20 = arith.constant 0.000000e+00 : f32
    %32 = vector.broadcast %cst_20 : f32 to vector<13x80xf32>
    %33 = arith.maximumf %31, %32 : vector<13x80xf32>
    %c704 = arith.constant 704 : index
    %c0_21 = arith.constant 0 : index
    %34 = vector.load %arg1[%c704, %c0_21] : memref<784x128xf32, #tpu.memory_space<vmem>>, vector<6x13xf32>
    %cst_22 = arith.constant dense<0.000000e+00> : vector<6x80xf32>
    %35 = tpu.matmul %34, %33, %cst_22 {dimension_numbers = #tpu.dot_dimension_numbers<[1], [0], [0], [1], [0, 0, 1, 1], [], []>} : vector<6x13xf32>, vector<13x80xf32>, vector<6x80xf32> -> vector<6x80xf32>
    %36 = vector.extract_strided_slice %35 {offsets = [0, 0], sizes = [5, 80], strides = [1, 1]} : vector<6x80xf32> to vector<5x80xf32>
    %c528 = arith.constant 528 : index
    %c0_23 = arith.constant 0 : index
    %37 = vector.load %arg1[%c528, %c0_23] : memref<784x128xf32, #tpu.memory_space<vmem>>, vector<80x32xf32>
    %cst_24 = arith.constant dense<0.000000e+00> : vector<5x32xf32>
    %38 = tpu.matmul %36, %37, %cst_24 {dimension_numbers = #tpu.dot_dimension_numbers<[1], [0], [0], [1], [0, 0, 1, 1], [], []>} : vector<5x80xf32>, vector<80x32xf32>, vector<5x32xf32> -> vector<5x32xf32>
    %39 = vector.extract_strided_slice %35 {offsets = [1, 0], sizes = [5, 80], strides = [1, 1]} : vector<6x80xf32> to vector<5x80xf32>
    %c608 = arith.constant 608 : index
    %c0_25 = arith.constant 0 : index
    %40 = vector.load %arg1[%c608, %c0_25] : memref<784x128xf32, #tpu.memory_space<vmem>>, vector<80x32xf32>
    %cst_26 = arith.constant dense<0.000000e+00> : vector<5x32xf32>
    %41 = tpu.matmul %39, %40, %cst_26 {dimension_numbers = #tpu.dot_dimension_numbers<[1], [0], [0], [1], [0, 0, 1, 1], [], []>} : vector<5x80xf32>, vector<80x32xf32>, vector<5x32xf32> -> vector<5x32xf32>
    %42 = arith.addf %38, %41 : vector<5x32xf32>
    %c736 = arith.constant 736 : index
    %c0_27 = arith.constant 0 : index
    %43 = vector.load %arg1[%c736, %c0_27] : memref<784x128xf32, #tpu.memory_space<vmem>>, vector<1x32xf32>
    %44 = vector.broadcast %43 : vector<1x32xf32> to vector<5x32xf32>
    %45 = arith.addf %42, %44 : vector<5x32xf32>
    %cst_28 = arith.constant 0.000000e+00 : f32
    %46 = vector.broadcast %cst_28 : f32 to vector<5x32xf32>
    %47 = arith.maximumf %45, %46 : vector<5x32xf32>
    %c712 = arith.constant 712 : index
    %c0_29 = arith.constant 0 : index
    %48 = vector.load %arg1[%c712, %c0_29] : memref<784x128xf32, #tpu.memory_space<vmem>>, vector<2x5xf32>
    %cst_30 = arith.constant dense<0.000000e+00> : vector<2x32xf32>
    %49 = tpu.matmul %48, %47, %cst_30 {dimension_numbers = #tpu.dot_dimension_numbers<[1], [0], [0], [1], [0, 0, 1, 1], [], []>} : vector<2x5xf32>, vector<5x32xf32>, vector<2x32xf32> -> vector<2x32xf32>
    %c744 = arith.constant 744 : index
    %c0_31 = arith.constant 0 : index
    %50 = vector.load %arg1[%c744, %c0_31] : memref<784x128xf32, #tpu.memory_space<vmem>>, vector<32x2xf32>
    %cst_32 = arith.constant dense<0.000000e+00> : vector<2x2xf32>
    %51 = tpu.matmul %49, %50, %cst_32 {dimension_numbers = #tpu.dot_dimension_numbers<[1], [0], [0], [1], [0, 0, 1, 1], [], []>} : vector<2x32xf32>, vector<32x2xf32>, vector<2x2xf32> -> vector<2x2xf32>
    %c776 = arith.constant 776 : index
    %c0_33 = arith.constant 0 : index
    %52 = vector.load %arg1[%c776, %c0_33] : memref<784x128xf32, #tpu.memory_space<vmem>>, vector<1x2xf32>
    %53 = vector.broadcast %52 : vector<1x2xf32> to vector<2x2xf32>
    %54 = arith.addf %51, %53 : vector<2x2xf32>
    %cst_34 = arith.constant dense<0xFF800000> : vector<2xf32>
    %55 = vector.multi_reduction <maximumf>, %54, %cst_34 [1] : vector<2x2xf32> to vector<2xf32>
    %56 = vector.shape_cast %55 : vector<2xf32> to vector<2x1xf32>
    %57 = vector.broadcast %56 : vector<2x1xf32> to vector<2x2xf32>
    %58 = arith.subf %54, %57 : vector<2x2xf32>
    %59 = math.exp %58 : vector<2x2xf32>
    %cst_35 = arith.constant dense<0.000000e+00> : vector<2xf32>
    %60 = vector.multi_reduction <add>, %59, %cst_35 [1] : vector<2x2xf32> to vector<2xf32>
    %61 = vector.shape_cast %60 : vector<2xf32> to vector<2x1xf32>
    %62 = math.log %61 : vector<2x1xf32>
    %63 = vector.broadcast %62 : vector<2x1xf32> to vector<2x2xf32>
    %64 = arith.subf %58, %63 : vector<2x2xf32>
    %c0_36 = arith.constant 0 : index
    %c0_37 = arith.constant 0 : index
    %65 = vector.load %arg2[%c0_36, %c0_37] : memref<2x2xf32, #tpu.memory_space<vmem>>, vector<2x2xf32>
    tpu.vector_store %arg2[%c0_36, %c0_37], %64 {strides = array<i32>} : memref<2x2xf32, #tpu.memory_space<vmem>>, vector<2x2xf32>,
    return
  }
}

</mosaic_0001>

<llo_original>
// kernel: forward.1
$region0: #{forward.1}
  #allocation0 [shape = 'u32[]', space=smem, size = 0x4, offset = 0x4, fixed_abs, tag = 'smem constant byte address 0x4 - core index']
  #allocation1 [shape = 'u32[144,128]{1,0:T(1,128)}', space=vmem, size = 0x12000, scoped, tag = 'internal scratch']
  %s0 = inlined_call_operand.vmem [shape: f32[32,64], index: 0, kind: input, shape index: {}]
  %s1 = inlined_call_operand.hbm [shape: f32[784,128], index: 1, kind: input, shape index: {}]
  %s2 = inlined_call_operand.hbm [shape: f32[2,2], index: 2, kind: output, shape index: {}]
  %s3 = sld [smem:[#allocation0]]
  $region22: #{forward.1} parent=0
    _
  %s5 = ssub.s32 1, %s3
  %s6 = scalar_select 0, %s5, %s3
  $region1: #{forward.1} parent=0
    #allocation2 [shape = 'u8[401408]{0}', space=vmem, size = 0x62000, scoped, tag = 'input window, operand 1, single buffered']
    #allocation3 [shape = 's32[1]{0}', space=sflag, size = 0x4, scoped, tag = 'scoped memory for forward.1']
    #allocation4 [shape = 's32[1]{0}', space=sflag, size = 0x4, scoped, tag = 'scoped memory for forward.1']
    #allocation5 [shape = 'u8[1024]{0}', space=vmem, size = 0x400, scoped, tag = 'output window, operand 0, single buffered']
    %7 = vsyncpa [#allocation3], 0
    %8 = vsyncpa [#allocation4], 0
    // Predicated region
    $region2: #{forward.1} parent=1 // pred_check
      _
    $region3: #{forward.1} parent=1 // pred_check_branch
      %10 = sbr.rel (0) target = $region5
    $region4: #{forward.1} parent=1 // pred_region
      _
    $region5: #{forward.1} parent=1 // pred_fallthru
      _
    // Predicated region
    $region6: #{forward.1} parent=1 // pred_check
      _
    $region7: #{forward.1} parent=1 // pred_check_branch
      %12 = sbr.rel (0) target = $region9
    $region8: #{forward.1} parent=1 // pred_region
      %s14 = ssub.s32 12544, 12544
      %15 = vsyncadd [#allocation3], %s14
      %s16 = sshll.u32 [#allocation2], 4
      %s17 = int_to_ptr.vmem [resolvable:$true] %s16
      %22 = dma.hbm_to_vmem [thread:$0]  %s1, 12544, %s17, [#allocation3], 128, 128, 8
    $region9: #{forward.1} parent=1 // pred_fallthru
      _
    // Predicated region
    $region10: #{forward.1} parent=1 // pred_check
      _
    $region11: #{forward.1} parent=1 // pred_check_branch
      %24 = sbr.rel (0) target = $region13
    $region12: #{forward.1} parent=1 // pred_region
      %25 = dma.done [#allocation3], 12544
    $region13: #{forward.1} parent=1 // pred_fallthru
      _
    %v26 = vld [vmem:[%s0] sm:$0xff]
    %v27 = vld [vmem:[%s0 + $0x8] sm:$0xff]
    %v28 = vld [vmem:[%s0 + $0x10] sm:$0xff]
    %v29 = vld [vmem:[%s0 + $0x18] sm:$0x3f]
    %v30 = vld [vmem:[#allocation2] sm:$0xff]
    %v31 = vld [vmem:[#allocation2 + $0x8] sm:$0xff]
    %v32 = vld [vmem:[#allocation2 + $0x10] sm:$0xff]
    %v33 = vld [vmem:[#allocation2 + $0x18] sm:$0xff]
    %v34 = vld [vmem:[#allocation2 + $0x20] sm:$0xff]
    %v35 = vld [vmem:[#allocation2 + $0x28] sm:$0xff]
    %v36 = vld [vmem:[#allocation2 + $0x30] sm:$0xff]
    %v37 = vld [vmem:[#allocation2 + $0x38] sm:$0xff]
    %v38 = vld [vmem:[%s0 + $0x1] sm:$0xff]
    %v39 = vld [vmem:[%s0 + $0x9] sm:$0xff]
    %v40 = vld [vmem:[%s0 + $0x11] sm:$0xff]
    %v41 = vld [vmem:[%s0 + $0x19] sm:$0x3f]
    %v42 = vld [vmem:[#allocation2 + $0x40] sm:$0xff]
    %v43 = vld [vmem:[#allocation2 + $0x48] sm:$0xff]
    %v44 = vld [vmem:[#allocation2 + $0x50] sm:$0xff]
    %v45 = vld [vmem:[#allocation2 + $0x58] sm:$0xff]
    %v46 = vld [vmem:[#allocation2 + $0x60] sm:$0xff]
    %v47 = vld [vmem:[#allocation2 + $0x68] sm:$0xff]
    %v48 = vld [vmem:[#allocation2 + $0x70] sm:$0xff]
    %v49 = vld [vmem:[#allocation2 + $0x78] sm:$0xff]
    %vm50 = vcmask 523264
    %v52 = vsel %vm50, %v38, 0
    %v55 = vsel %vm50, %v39, 0
    %v58 = vsel %vm50, %v40, 0
    %v61 = vsel %vm50, %v41, 0
    %63 = vmatprep.subr.mxu0 0.0
    %64 = vmatpush1.msra.mxu0 %v42
    %65 = vmatprep.subr.mxu0 0.0
    %66 = vmatpush1.msra.mxu0 %v43
    %67 = vmatprep.subr.mxu0 0.0
    %68 = vmatpush1.msra.mxu0 %v44
    %69 = vmatprep.subr.mxu0 0.0
    %70 = vmatpush1.msra.mxu0 %v45
    %71 = vmatprep.subr.mxu0 0.0
    %72 = vmatpush1.msra.mxu0 %v46
    %73 = vmatprep.subr.mxu0 0.0
    %74 = vmatpush1.msra.mxu0 %v47
    %75 = vmatprep.subr.mxu0 0.0
    %76 = vmatpush1.msra.mxu0 %v48
    %77 = vmatprep.subr.mxu0 0.0
    %78 = vmatpush1.msra.mxu0 %v49
    %79 = vmatprep.subr.mxu0 0.0
    %80 = vmatpush1.msra.mxu0 0.0
    %81 = vmatprep.subr.mxu0 0.0
    %82 = vmatpush1.msra.mxu0 0.0
    %83 = vmatprep.subr.mxu0 0.0
    %84 = vmatpush1.msra.mxu0 0.0
    %85 = vmatprep.subr.mxu0 0.0
    %86 = vmatpush1.msra.mxu0 0.0
    %87 = vmatprep.subr.mxu0 0.0
    %88 = vmatpush1.msra.mxu0 0.0
    %89 = vmatprep.subr.mxu0 0.0
    %90 = vmatpush1.msra.mxu0 0.0
    %91 = vmatprep.subr.mxu0 0.0
    %92 = vmatpush1.msra.mxu0 0.0
    %93 = vmatprep.subr.mxu0 0.0
    %94 = vmatpush1.msra.mxu0 0.0
    %95 = vmatprep.subr.mxu0 0.0
    %96 = vmatpush1.msra.mxu0 0.0
    %97 = vmatprep.subr.mxu0 0.0
    %98 = vmatpush1.msra.mxu0 0.0
    %99 = vmatprep.subr.mxu0 0.0
    %100 = vmatpush1.msra.mxu0 0.0
    %101 = vmatprep.subr.mxu0 0.0
    %102 = vmatpush1.msra.mxu0 0.0
    %103 = vmatprep.subr.mxu0 0.0
    %104 = vmatpush1.msra.mxu0 0.0
    %105 = vmatprep.subr.mxu0 0.0
    %106 = vmatpush1.msra.mxu0 0.0
    %107 = vmatprep.subr.mxu0 0.0
    %108 = vmatpush1.msra.mxu0 0.0
    %109 = vmatprep.subr.mxu0 0.0
    %110 = vmatpush1.msra.mxu0 0.0
    %111 = vmatprep.subr.mxu0 0.0
    %112 = vmatpush1.msra.mxu0 0.0
    %113 = vmatprep.subr.mxu0 0.0
    %114 = vmatpush1.msra.mxu0 0.0
    %115 = vmatprep.subr.mxu0 0.0
    %116 = vmatpush1.msra.mxu0 0.0
    %117 = vmatprep.subr.mxu0 0.0
    %118 = vmatpush1.msra.mxu0 0.0
    %119 = vmatprep.subr.mxu0 0.0
    %120 = vmatpush1.msra.mxu0 0.0
    %121 = vmatprep.subr.mxu0 0.0
    %122 = vmatpush1.msra.mxu0 0.0
    %123 = vmatprep.subr.mxu0 0.0
    %124 = vmatpush1.msra.mxu0 0.0
    %125 = vmatprep.subr.mxu0 0.0
    %126 = vmatpush1.msra.mxu0 0.0
    %127 = vmatprep.mubr.f32.mxu0 0.0
    %128 = vmatmul.mubr.f32.gmra.mrb[0].mxu0 %v52
    %v129 = vpop.f32.mrb[0].mxu0
    %v130 = vadd.f32 0.0, %v129
    %v131 = vpop.f32.mrb[0].mxu0
    %132 = vmatprep.mubr.f32.mxu0 0.0
    %133 = vmatmul.mubr.f32.gmra.mrb[0].mxu0 %v55
    %v134 = vpop.f32.mrb[0].mxu0
    %v135 = vadd.f32 0.0, %v134
    %v136 = vpop.f32.mrb[0].mxu0
    %137 = vmatprep.mubr.f32.mxu0 0.0
    %138 = vmatmul.mubr.f32.gmra.mrb[0].mxu0 %v58
    %v139 = vpop.f32.mrb[0].mxu0
    %v140 = vadd.f32 0.0, %v139
    %v141 = vpop.f32.mrb[0].mxu0
    %142 = vmatprep.mubr.f32.mxu0 0.0
    %143 = vmatmul.mubr.f32.gmra.mrb[0].mxu0 %v61
    %v144 = vpop.f32.mrb[0].mxu0
    %v145 = vadd.f32 0.0, %v144
    %v146 = vpop.f32.mrb[0].mxu0
    %147 = vdwg.mxu0
    %v149 = vsel %vm50, %v26, 0
    %v152 = vsel %vm50, %v27, 0
    %v155 = vsel %vm50, %v28, 0
    %v158 = vsel %vm50, %v29, 0
    %160 = vmatprep.subr.mxu0 0.0
    %161 = vmatpush1.msra.mxu0 %v30
    %162 = vmatprep.subr.mxu0 0.0
    %163 = vmatpush1.msra.mxu0 %v31
    %164 = vmatprep.subr.mxu0 0.0
    %165 = vmatpush1.msra.mxu0 %v32
    %166 = vmatprep.subr.mxu0 0.0
    %167 = vmatpush1.msra.mxu0 %v33
    %168 = vmatprep.subr.mxu0 0.0
    %169 = vmatpush1.msra.mxu0 %v34
    %170 = vmatprep.subr.mxu0 0.0
    %171 = vmatpush1.msra.mxu0 %v35
    %172 = vmatprep.subr.mxu0 0.0
    %173 = vmatpush1.msra.mxu0 %v36
    %174 = vmatprep.subr.mxu0 0.0
    %175 = vmatpush1.msra.mxu0 %v37
    %176 = vmatprep.subr.mxu0 0.0
    %177 = vmatpush1.msra.mxu0 0.0
    %178 = vmatprep.subr.mxu0 0.0
    %179 = vmatpush1.msra.mxu0 0.0
    %180 = vmatprep.subr.mxu0 0.0
    %181 = vmatpush1.msra.mxu0 0.0
    %182 = vmatprep.subr.mxu0 0.0
    %183 = vmatpush1.msra.mxu0 0.0
    %184 = vmatprep.subr.mxu0 0.0
    %185 = vmatpush1.msra.mxu0 0.0
    %186 = vmatprep.subr.mxu0 0.0
    %187 = vmatpush1.msra.mxu0 0.0
    %188 = vmatprep.subr.mxu0 0.0
    %189 = vmatpush1.msra.mxu0 0.0
    %190 = vmatprep.subr.mxu0 0.0
    %191 = vmatpush1.msra.mxu0 0.0
    %192 = vmatprep.subr.mxu0 0.0
    %193 = vmatpush1.msra.mxu0 0.0
    %194 = vmatprep.subr.mxu0 0.0
    %195 = vmatpush1.msra.mxu0 0.0
    %196 = vmatprep.subr.mxu0 0.0
    %197 = vmatpush1.msra.mxu0 0.0
    %198 = vmatprep.subr.mxu0 0.0
    %199 = vmatpush1.msra.mxu0 0.0
    %200 = vmatprep.subr.mxu0 0.0
    %201 = vmatpush1.msra.mxu0 0.0
    %202 = vmatprep.subr.mxu0 0.0
    %203 = vmatpush1.msra.mxu0 0.0
    %204 = vmatprep.subr.mxu0 0.0
    %205 = vmatpush1.msra.mxu0 0.0
    %206 = vmatprep.subr.mxu0 0.0
    %207 = vmatpush1.msra.mxu0 0.0
    %208 = vmatprep.subr.mxu0 0.0
    %209 = vmatpush1.msra.mxu0 0.0
    %210 = vmatprep.subr.mxu0 0.0
    %211 = vmatpush1.msra.mxu0 0.0
    %212 = vmatprep.subr.mxu0 0.0
    %213 = vmatpush1.msra.mxu0 0.0
    %214 = vmatprep.subr.mxu0 0.0
    %215 = vmatpush1.msra.mxu0 0.0
    %216 = vmatprep.subr.mxu0 0.0
    %217 = vmatpush1.msra.mxu0 0.0
    %218 = vmatprep.subr.mxu0 0.0
    %219 = vmatpush1.msra.mxu0 0.0
    %220 = vmatprep.subr.mxu0 0.0
    %221 = vmatpush1.msra.mxu0 0.0
    %222 = vmatprep.subr.mxu0 0.0
    %223 = vmatpush1.msra.mxu0 0.0
    %224 = vmatprep.mubr.f32.mxu0 0.0
    %225 = vmatmul.mubr.f32.gmra.mrb[0].mxu0 %v149
    %v226 = vpop.f32.mrb[0].mxu0
    %v227 = vadd.f32 %v130, %v226
    %v228 = vpop.f32.mrb[0].mxu0
    %229 = vmatprep.mubr.f32.mxu0 0.0
    %230 = vmatmul.mubr.f32.gmra.mrb[0].mxu0 %v152
    %v231 = vpop.f32.mrb[0].mxu0
    %v232 = vadd.f32 %v135, %v231
    %v233 = vpop.f32.mrb[0].mxu0
    %234 = vmatprep.mubr.f32.mxu0 0.0
    %235 = vmatmul.mubr.f32.gmra.mrb[0].mxu0 %v155
    %v236 = vpop.f32.mrb[0].mxu0
    %v237 = vadd.f32 %v140, %v236
    %v238 = vpop.f32.mrb[0].mxu0
    %239 = vmatprep.mubr.f32.mxu0 0.0
    %240 = vmatmul.mubr.f32.gmra.mrb[0].mxu0 %v158
    %v241 = vpop.f32.mrb[0].mxu0
    %v242 = vadd.f32 %v145, %v241
    %v243 = vpop.f32.mrb[0].mxu0
    %244 = vdwg.mxu0
    %v245 = vld [vmem:[%s0 + $0x2] sm:$0xff]
    %v246 = vld [vmem:[%s0 + $0xa] sm:$0xff]
    %v247 = vld [vmem:[%s0 + $0x12] sm:$0xff]
    %v248 = vld [vmem:[%s0 + $0x1a] sm:$0x3f]
    %v249 = vld [vmem:[#allocation2 + $0x80] sm:$0xff]
    %v250 = vld [vmem:[#allocation2 + $0x88] sm:$0xff]
    %v251 = vld [vmem:[#allocation2 + $0x90] sm:$0xff]
    %v252 = vld [vmem:[#allocation2 + $0x98] sm:$0xff]
    %v253 = vld [vmem:[#allocation2 + $0xa0] sm:$0xff]
    %v254 = vld [vmem:[#allocation2 + $0xa8] sm:$0xff]
    %v255 = vld [vmem:[#allocation2 + $0xb0] sm:$0xff]
    %v256 = vld [vmem:[#allocation2 + $0xb8] sm:$0xff]
    %v258 = vsel %vm50, %v245, 0
    %v261 = vsel %vm50, %v246, 0
    %v264 = vsel %vm50, %v247, 0
    %v267 = vsel %vm50, %v248, 0
    %269 = vmatprep.subr.mxu0 0.0
    %270 = vmatpush1.msra.mxu0 %v249
    %271 = vmatprep.subr.mxu0 0.0
    %272 = vmatpush1.msra.mxu0 %v250
    %273 = vmatprep.subr.mxu0 0.0
    %274 = vmatpush1.msra.mxu0 %v251
    %275 = vmatprep.subr.mxu0 0.0
    %276 = vmatpush1.msra.mxu0 %v252
    %277 = vmatprep.subr.mxu0 0.0
    %278 = vmatpush1.msra.mxu0 %v253
    %279 = vmatprep.subr.mxu0 0.0
    %280 = vmatpush1.msra.mxu0 %v254
    %281 = vmatprep.subr.mxu0 0.0
    %282 = vmatpush1.msra.mxu0 %v255
    %283 = vmatprep.subr.mxu0 0.0
    %284 = vmatpush1.msra.mxu0 %v256
    %285 = vmatprep.subr.mxu0 0.0
    %286 = vmatpush1.msra.mxu0 0.0
    %287 = vmatprep.subr.mxu0 0.0
    %288 = vmatpush1.msra.mxu0 0.0
    %289 = vmatprep.subr.mxu0 0.0
    %290 = vmatpush1.msra.mxu0 0.0
    %291 = vmatprep.subr.mxu0 0.0
    %292 = vmatpush1.msra.mxu0 0.0
    %293 = vmatprep.subr.mxu0 0.0
    %294 = vmatpush1.msra.mxu0 0.0
    %295 = vmatprep.subr.mxu0 0.0
    %296 = vmatpush1.msra.mxu0 0.0
    %297 = vmatprep.subr.mxu0 0.0
    %298 = vmatpush1.msra.mxu0 0.0
    %299 = vmatprep.subr.mxu0 0.0
    %300 = vmatpush1.msra.mxu0 0.0
    %301 = vmatprep.subr.mxu0 0.0
    %302 = vmatpush1.msra.mxu0 0.0
    %303 = vmatprep.subr.mxu0 0.0
    %304 = vmatpush1.msra.mxu0 0.0
    %305 = vmatprep.subr.mxu0 0.0
    %306 = vmatpush1.msra.mxu0 0.0
    %307 = vmatprep.subr.mxu0 0.0
    %308 = vmatpush1.msra.mxu0 0.0
    %309 = vmatprep.subr.mxu0 0.0
    %310 = vmatpush1.msra.mxu0 0.0
    %311 = vmatprep.subr.mxu0 0.0
    %312 = vmatpush1.msra.mxu0 0.0
    %313 = vmatprep.subr.mxu0 0.0
    %314 = vmatpush1.msra.mxu0 0.0
    %315 = vmatprep.subr.mxu0 0.0
    %316 = vmatpush1.msra.mxu0 0.0
    %317 = vmatprep.subr.mxu0 0.0
    %318 = vmatpush1.msra.mxu0 0.0
    %319 = vmatprep.subr.mxu0 0.0
    %320 = vmatpush1.msra.mxu0 0.0
    %321 = vmatprep.subr.mxu0 0.0
    %322 = vmatpush1.msra.mxu0 0.0
    %323 = vmatprep.subr.mxu0 0.0
    %324 = vmatpush1.msra.mxu0 0.0
    %325 = vmatprep.subr.mxu0 0.0
    %326 = vmatpush1.msra.mxu0 0.0
    %327 = vmatprep.subr.mxu0 0.0
    %328 = vmatpush1.msra.mxu0 0.0
    %329 = vmatprep.subr.mxu0 0.0
    %330 = vmatpush1.msra.mxu0 0.0
    %331 = vmatprep.subr.mxu0 0.0
    %332 = vmatpush1.msra.mxu0 0.0
    %333 = vmatprep.mubr.f32.mxu0 0.0
    %334 = vmatmul.mubr.f32.gmra.mrb[0].mxu0 %v258
    %v335 = vpop.f32.mrb[0].mxu0
    %v336 = vadd.f32 0.0, %v335
    %v337 = vpop.f32.mrb[0].mxu0
    %338 = vmatprep.mubr.f32.mxu0 0.0
    %339 = vmatmul.mubr.f32.gmra.mrb[0].mxu0 %v261
    %v340 = vpop.f32.mrb[0].mxu0
    %v341 = vadd.f32 0.0, %v340
    %v342 = vpop.f32.mrb[0].mxu0
    %343 = vmatprep.mubr.f32.mxu0 0.0
    %344 = vmatmul.mubr.f32.gmra.mrb[0].mxu0 %v264
    %v345 = vpop.f32.mrb[0].mxu0
    %v346 = vadd.f32 0.0, %v345
    %v347 = vpop.f32.mrb[0].mxu0
    %348 = vmatprep.mubr.f32.mxu0 0.0
    %349 = vmatmul.mubr.f32.gmra.mrb[0].mxu0 %v267
    %v350 = vpop.f32.mrb[0].mxu0
    %v351 = vadd.f32 0.0, %v350
    %v352 = vpop.f32.mrb[0].mxu0
    %353 = vdwg.mxu0
    %v354 = vadd.f32 %v227, %v336
    %v355 = vadd.f32 %v232, %v341
    %v356 = vadd.f32 %v237, %v346
    %v357 = vadd.f32 %v242, %v351
    %v358 = vld [vmem:[#allocation2 + $0x2d0] sm:$0x1]
    %v359 = vlaneseq
    %v360 = vshrl.u32 %v359, 7
    %v361 = vsub.s32 0, %v360
    %v362 = vrot.slane %v358, %v361
    %v363 = vadd.f32 %v354, %v362
    %v364 = vadd.f32 %v355, %v362
    %v365 = vadd.f32 %v356, %v362
    %v366 = vadd.f32 %v357, %v362
    %v367 = vmax.f32 %v363, 0.0
    %v368 = vmax.f32 %v364, 0.0
    %v369 = vmax.f32 %v365, 0.0
    %v370 = vmax.f32 %v366, 0.0
    %v371 = vld [vmem:[#allocation2 + $0x2b0] sm:$0xff]
    %v372 = vld [vmem:[#allocation2 + $0x2b8] sm:$0x7f]
    %vm373 = vcmask 244736
    %v375 = vsel %vm373, %v371, 0
    %v378 = vsel %vm373, %v372, 0
    %vm380 = vcmask 1045504
    %v382 = vsel %vm380, %v370, 0
    %384 = vmatprep.subr.mxu0 0.0
    %385 = vmatpush1.msra.mxu0 %v367
    %386 = vmatprep.subr.mxu0 0.0
    %387 = vmatpush1.msra.mxu0 %v368
    %388 = vmatprep.subr.mxu0 0.0
    %389 = vmatpush1.msra.mxu0 %v369
    %390 = vmatprep.subr.mxu0 0.0
    %391 = vmatpush1.msra.mxu0 %v382
    %392 = vmatprep.subr.mxu0 0.0
    %393 = vmatpush1.msra.mxu0 0.0
    %394 = vmatprep.subr.mxu0 0.0
    %395 = vmatpush1.msra.mxu0 0.0
    %396 = vmatprep.subr.mxu0 0.0
    %397 = vmatpush1.msra.mxu0 0.0
    %398 = vmatprep.subr.mxu0 0.0
    %399 = vmatpush1.msra.mxu0 0.0
    %400 = vmatprep.subr.mxu0 0.0
    %401 = vmatpush1.msra.mxu0 0.0
    %402 = vmatprep.subr.mxu0 0.0
    %403 = vmatpush1.msra.mxu0 0.0
    %404 = vmatprep.subr.mxu0 0.0
    %405 = vmatpush1.msra.mxu0 0.0
    %406 = vmatprep.subr.mxu0 0.0
    %407 = vmatpush1.msra.mxu0 0.0
    %408 = vmatprep.subr.mxu0 0.0
    %409 = vmatpush1.msra.mxu0 0.0
    %410 = vmatprep.subr.mxu0 0.0
    %411 = vmatpush1.msra.mxu0 0.0
    %412 = vmatprep.subr.mxu0 0.0
    %413 = vmatpush1.msra.mxu0 0.0
    %414 = vmatprep.subr.mxu0 0.0
    %415 = vmatpush1.msra.mxu0 0.0
    %416 = vmatprep.subr.mxu0 0.0
    %417 = vmatpush1.msra.mxu0 0.0
    %418 = vmatprep.subr.mxu0 0.0
    %419 = vmatpush1.msra.mxu0 0.0
    %420 = vmatprep.subr.mxu0 0.0
    %421 = vmatpush1.msra.mxu0 0.0
    %422 = vmatprep.subr.mxu0 0.0
    %423 = vmatpush1.msra.mxu0 0.0
    %424 = vmatprep.subr.mxu0 0.0
    %425 = vmatpush1.msra.mxu0 0.0
    %426 = vmatprep.subr.mxu0 0.0
    %427 = vmatpush1.msra.mxu0 0.0
    %428 = vmatprep.subr.mxu0 0.0
    %429 = vmatpush1.msra.mxu0 0.0
    %430 = vmatprep.subr.mxu0 0.0
    %431 = vmatpush1.msra.mxu0 0.0
    %432 = vmatprep.subr.mxu0 0.0
    %433 = vmatpush1.msra.mxu0 0.0
    %434 = vmatprep.subr.mxu0 0.0
    %435 = vmatpush1.msra.mxu0 0.0
    %436 = vmatprep.subr.mxu0 0.0
    %437 = vmatpush1.msra.mxu0 0.0
    %438 = vmatprep.subr.mxu0 0.0
    %439 = vmatpush1.msra.mxu0 0.0
    %440 = vmatprep.subr.mxu0 0.0
    %441 = vmatpush1.msra.mxu0 0.0
    %442 = vmatprep.subr.mxu0 0.0
    %443 = vmatpush1.msra.mxu0 0.0
    %444 = vmatprep.subr.mxu0 0.0
    %445 = vmatpush1.msra.mxu0 0.0
    %446 = vmatprep.subr.mxu0 0.0
    %447 = vmatpush1.msra.mxu0 0.0
    %448 = vmatprep.mubr.f32.mxu0 0.0
    %449 = vmatmul.mubr.f32.gmra.mrb[0].mxu0 %v375
    %v450 = vpop.f32.mrb[0].mxu0
    %v451 = vadd.f32 0.0, %v450
    %v452 = vpop.f32.mrb[0].mxu0
    %453 = vmatprep.mubr.f32.mxu0 0.0
    %454 = vmatmul.mubr.f32.gmra.mrb[0].mxu0 %v378
    %v455 = vpop.f32.mrb[0].mxu0
    %v456 = vadd.f32 0.0, %v455
    %v457 = vpop.f32.mrb[0].mxu0
    %458 = vdwg.mxu0
    %v459 = vld [vmem:[#allocation2 + $0xc0] sm:$0xff]
    %v460 = vld [vmem:[#allocation2 + $0xc8] sm:$0xff]
    %v461 = vld [vmem:[#allocation2 + $0xd0] sm:$0xff]
    %v462 = vld [vmem:[#allocation2 + $0xd8] sm:$0xff]
    %v463 = vld [vmem:[#allocation2 + $0xe0] sm:$0xff]
    %v464 = vld [vmem:[#allocation2 + $0xe8] sm:$0xff]
    %v465 = vld [vmem:[#allocation2 + $0xf0] sm:$0xff]
    %v466 = vld [vmem:[#allocation2 + $0xf8] sm:$0xff]
    %v467 = vld [vmem:[#allocation2 + $0x100] sm:$0xff]
    %v468 = vld [vmem:[#allocation2 + $0x108] sm:$0xff]
    %v469 = vld [vmem:[#allocation2 + $0x110] sm:$0xff]
    %v470 = vld [vmem:[#allocation2 + $0x118] sm:$0xff]
    %v471 = vld [vmem:[#allocation2 + $0x120] sm:$0xff]
    %v472 = vld [vmem:[#allocation2 + $0x128] sm:$0xff]
    %v473 = vld [vmem:[#allocation2 + $0x130] sm:$0xff]
    %v474 = vld [vmem:[#allocation2 + $0x138] sm:$0xff]
    %v475 = vld [vmem:[#allocation2 + $0x140] sm:$0xff]
    %v476 = vld [vmem:[#allocation2 + $0x148] sm:$0xff]
    %v477 = vld [vmem:[#allocation2 + $0x150] sm:$0xff]
    %v478 = vld [vmem:[#allocation2 + $0x158] sm:$0xff]
    %v479 = vld [vmem:[#allocation2 + $0x160] sm:$0xff]
    %v480 = vld [vmem:[#allocation2 + $0x168] sm:$0xff]
    %v481 = vld [vmem:[#allocation2 + $0x170] sm:$0xff]
    %v482 = vld [vmem:[#allocation2 + $0x178] sm:$0xff]
    %v483 = vld [vmem:[#allocation2 + $0x180] sm:$0xff]
    %v484 = vld [vmem:[#allocation2 + $0x188] sm:$0xff]
    %v485 = vld [vmem:[#allocation2 + $0x190] sm:$0xff]
    %v486 = vld [vmem:[#allocation2 + $0x198] sm:$0xff]
    %vm489 = vcmask 1046528
    %v490 = vrot.slane %v451, 1
    %v491 = vrot.slane %v456, 1
    %v492 = vsel %vm489, %v490, %v491
    %vm493 = vcmask 916480
    %v494 = vsel %vm493, %v492, 0
    %v496 = vsel %vm493, %v491, 0
    %498 = vmatprep.subr.mxu0 0.0
    %499 = vmatpush1.msra.mxu0 %v473
    %500 = vmatprep.subr.mxu0 0.0
    %501 = vmatpush1.msra.mxu0 %v474
    %502 = vmatprep.subr.mxu0 0.0
    %503 = vmatpush1.msra.mxu0 %v475
    %504 = vmatprep.subr.mxu0 0.0
    %505 = vmatpush1.msra.mxu0 %v476
    %506 = vmatprep.subr.mxu0 0.0
    %507 = vmatpush1.msra.mxu0 %v477
    %508 = vmatprep.subr.mxu0 0.0
    %509 = vmatpush1.msra.mxu0 %v478
    %510 = vmatprep.subr.mxu0 0.0
    %511 = vmatpush1.msra.mxu0 %v479
    %512 = vmatprep.subr.mxu0 0.0
    %513 = vmatpush1.msra.mxu0 %v480
    %514 = vmatprep.subr.mxu0 0.0
    %515 = vmatpush1.msra.mxu0 %v481
    %516 = vmatprep.subr.mxu0 0.0
    %517 = vmatpush1.msra.mxu0 %v482
    %518 = vmatprep.subr.mxu0 0.0
    %519 = vmatpush1.msra.mxu0 %v483
    %520 = vmatprep.subr.mxu0 0.0
    %521 = vmatpush1.msra.mxu0 %v484
    %522 = vmatprep.subr.mxu0 0.0
    %523 = vmatpush1.msra.mxu0 %v485
    %524 = vmatprep.subr.mxu0 0.0
    %525 = vmatpush1.msra.mxu0 %v486
    %526 = vmatprep.subr.mxu0 0.0
    %527 = vmatpush1.msra.mxu0 0.0
    %528 = vmatprep.subr.mxu0 0.0
    %529 = vmatpush1.msra.mxu0 0.0
    %530 = vmatprep.subr.mxu0 0.0
    %531 = vmatpush1.msra.mxu0 0.0
    %532 = vmatprep.subr.mxu0 0.0
    %533 = vmatpush1.msra.mxu0 0.0
    %534 = vmatprep.subr.mxu0 0.0
    %535 = vmatpush1.msra.mxu0 0.0
    %536 = vmatprep.subr.mxu0 0.0
    %537 = vmatpush1.msra.mxu0 0.0
    %538 = vmatprep.subr.mxu0 0.0
    %539 = vmatpush1.msra.mxu0 0.0
    %540 = vmatprep.subr.mxu0 0.0
    %541 = vmatpush1.msra.mxu0 0.0
    %542 = vmatprep.subr.mxu0 0.0
    %543 = vmatpush1.msra.mxu0 0.0
    %544 = vmatprep.subr.mxu0 0.0
    %545 = vmatpush1.msra.mxu0 0.0
    %546 = vmatprep.subr.mxu0 0.0
    %547 = vmatpush1.msra.mxu0 0.0
    %548 = vmatprep.subr.mxu0 0.0
    %549 = vmatpush1.msra.mxu0 0.0
    %550 = vmatprep.subr.mxu0 0.0
    %551 = vmatpush1.msra.mxu0 0.0
    %552 = vmatprep.subr.mxu0 0.0
    %553 = vmatpush1.msra.mxu0 0.0
    %554 = vmatprep.subr.mxu0 0.0
    %555 = vmatpush1.msra.mxu0 0.0
    %556 = vmatprep.subr.mxu0 0.0
    %557 = vmatpush1.msra.mxu0 0.0
    %558 = vmatprep.subr.mxu0 0.0
    %559 = vmatpush1.msra.mxu0 0.0
    %560 = vmatprep.subr.mxu0 0.0
    %561 = vmatpush1.msra.mxu0 0.0
    %562 = vmatprep.mubr.f32.mxu0 0.0
    %563 = vmatmul.mubr.f32.gmra.mrb[0].mxu0 %v494
    %v564 = vpop.f32.mrb[0].mxu0
    %v565 = vadd.f32 0.0, %v564
    %v566 = vpop.f32.mrb[0].mxu0
    %567 = vmatprep.mubr.f32.mxu0 0.0
    %568 = vmatmul.mubr.f32.gmra.mrb[0].mxu0 %v496
    %v569 = vpop.f32.mrb[0].mxu0
    %v570 = vadd.f32 0.0, %v569
    %v571 = vpop.f32.mrb[0].mxu0
    %572 = vdwg.mxu0
    %v573 = vsel %vm493, %v451, 0
    %v575 = vsel %vm493, %v456, 0
    %577 = vmatprep.subr.mxu0 0.0
    %578 = vmatpush1.msra.mxu0 %v459
    %579 = vmatprep.subr.mxu0 0.0
    %580 = vmatpush1.msra.mxu0 %v460
    %581 = vmatprep.subr.mxu0 0.0
    %582 = vmatpush1.msra.mxu0 %v461
    %583 = vmatprep.subr.mxu0 0.0
    %584 = vmatpush1.msra.mxu0 %v462
    %585 = vmatprep.subr.mxu0 0.0
    %586 = vmatpush1.msra.mxu0 %v463
    %587 = vmatprep.subr.mxu0 0.0
    %588 = vmatpush1.msra.mxu0 %v464
    %589 = vmatprep.subr.mxu0 0.0
    %590 = vmatpush1.msra.mxu0 %v465
    %591 = vmatprep.subr.mxu0 0.0
    %592 = vmatpush1.msra.mxu0 %v466
    %593 = vmatprep.subr.mxu0 0.0
    %594 = vmatpush1.msra.mxu0 %v467
    %595 = vmatprep.subr.mxu0 0.0
    %596 = vmatpush1.msra.mxu0 %v468
    %597 = vmatprep.subr.mxu0 0.0
    %598 = vmatpush1.msra.mxu0 %v469
    %599 = vmatprep.subr.mxu0 0.0
    %600 = vmatpush1.msra.mxu0 %v470
    %601 = vmatprep.subr.mxu0 0.0
    %602 = vmatpush1.msra.mxu0 %v471
    %603 = vmatprep.subr.mxu0 0.0
    %604 = vmatpush1.msra.mxu0 %v472
    %605 = vmatprep.subr.mxu0 0.0
    %606 = vmatpush1.msra.mxu0 0.0
    %607 = vmatprep.subr.mxu0 0.0
    %608 = vmatpush1.msra.mxu0 0.0
    %609 = vmatprep.subr.mxu0 0.0
    %610 = vmatpush1.msra.mxu0 0.0
    %611 = vmatprep.subr.mxu0 0.0
    %612 = vmatpush1.msra.mxu0 0.0
    %613 = vmatprep.subr.mxu0 0.0
    %614 = vmatpush1.msra.mxu0 0.0
    %615 = vmatprep.subr.mxu0 0.0
    %616 = vmatpush1.msra.mxu0 0.0
    %617 = vmatprep.subr.mxu0 0.0
    %618 = vmatpush1.msra.mxu0 0.0
    %619 = vmatprep.subr.mxu0 0.0
    %620 = vmatpush1.msra.mxu0 0.0
    %621 = vmatprep.subr.mxu0 0.0
    %622 = vmatpush1.msra.mxu0 0.0
    %623 = vmatprep.subr.mxu0 0.0
    %624 = vmatpush1.msra.mxu0 0.0
    %625 = vmatprep.subr.mxu0 0.0
    %626 = vmatpush1.msra.mxu0 0.0
    %627 = vmatprep.subr.mxu0 0.0
    %628 = vmatpush1.msra.mxu0 0.0
    %629 = vmatprep.subr.mxu0 0.0
    %630 = vmatpush1.msra.mxu0 0.0
    %631 = vmatprep.subr.mxu0 0.0
    %632 = vmatpush1.msra.mxu0 0.0
    %633 = vmatprep.subr.mxu0 0.0
    %634 = vmatpush1.msra.mxu0 0.0
    %635 = vmatprep.subr.mxu0 0.0
    %636 = vmatpush1.msra.mxu0 0.0
    %637 = vmatprep.subr.mxu0 0.0
    %638 = vmatpush1.msra.mxu0 0.0
    %639 = vmatprep.subr.mxu0 0.0
    %640 = vmatpush1.msra.mxu0 0.0
    %641 = vmatprep.mubr.f32.mxu0 0.0
    %642 = vmatmul.mubr.f32.gmra.mrb[0].mxu0 %v573
    %v643 = vpop.f32.mrb[0].mxu0
    %v644 = vadd.f32 %v565, %v643
    %v645 = vpop.f32.mrb[0].mxu0
    %646 = vmatprep.mubr.f32.mxu0 0.0
    %647 = vmatmul.mubr.f32.gmra.mrb[0].mxu0 %v575
    %v648 = vpop.f32.mrb[0].mxu0
    %v649 = vadd.f32 %v570, %v648
    %v650 = vpop.f32.mrb[0].mxu0
    %651 = vdwg.mxu0
    %v652 = vld [vmem:[#allocation2 + $0x1a0] sm:$0xff]
    %v653 = vld [vmem:[#allocation2 + $0x1a8] sm:$0xff]
    %v654 = vld [vmem:[#allocation2 + $0x1b0] sm:$0xff]
    %v655 = vld [vmem:[#allocation2 + $0x1b8] sm:$0xff]
    %v656 = vld [vmem:[#allocation2 + $0x1c0] sm:$0xff]
    %v657 = vld [vmem:[#allocation2 + $0x1c8] sm:$0xff]
    %v658 = vld [vmem:[#allocation2 + $0x1d0] sm:$0xff]
    %v659 = vld [vmem:[#allocation2 + $0x1d8] sm:$0xff]
    %v660 = vld [vmem:[#allocation2 + $0x1e0] sm:$0xff]
    %v661 = vld [vmem:[#allocation2 + $0x1e8] sm:$0xff]
    %v662 = vld [vmem:[#allocation2 + $0x1f0] sm:$0xff]
    %v663 = vld [vmem:[#allocation2 + $0x1f8] sm:$0xff]
    %v664 = vld [vmem:[#allocation2 + $0x200] sm:$0xff]
    %v665 = vld [vmem:[#allocation2 + $0x208] sm:$0xff]
    %v666 = vrot.slane %v451, 2
    %v667 = vrot.slane %v456, 2
    %v668 = vsel %vm380, %v666, %v667
    %v669 = vsel %vm493, %v668, 0
    %v671 = vsel %vm493, %v667, 0
    %673 = vmatprep.subr.mxu0 0.0
    %674 = vmatpush1.msra.mxu0 %v652
    %675 = vmatprep.subr.mxu0 0.0
    %676 = vmatpush1.msra.mxu0 %v653
    %677 = vmatprep.subr.mxu0 0.0
    %678 = vmatpush1.msra.mxu0 %v654
    %679 = vmatprep.subr.mxu0 0.0
    %680 = vmatpush1.msra.mxu0 %v655
    %681 = vmatprep.subr.mxu0 0.0
    %682 = vmatpush1.msra.mxu0 %v656
    %683 = vmatprep.subr.mxu0 0.0
    %684 = vmatpush1.msra.mxu0 %v657
    %685 = vmatprep.subr.mxu0 0.0
    %686 = vmatpush1.msra.mxu0 %v658
    %687 = vmatprep.subr.mxu0 0.0
    %688 = vmatpush1.msra.mxu0 %v659
    %689 = vmatprep.subr.mxu0 0.0
    %690 = vmatpush1.msra.mxu0 %v660
    %691 = vmatprep.subr.mxu0 0.0
    %692 = vmatpush1.msra.mxu0 %v661
    %693 = vmatprep.subr.mxu0 0.0
    %694 = vmatpush1.msra.mxu0 %v662
    %695 = vmatprep.subr.mxu0 0.0
    %696 = vmatpush1.msra.mxu0 %v663
    %697 = vmatprep.subr.mxu0 0.0
    %698 = vmatpush1.msra.mxu0 %v664
    %699 = vmatprep.subr.mxu0 0.0
    %700 = vmatpush1.msra.mxu0 %v665
    %701 = vmatprep.subr.mxu0 0.0
    %702 = vmatpush1.msra.mxu0 0.0
    %703 = vmatprep.subr.mxu0 0.0
    %704 = vmatpush1.msra.mxu0 0.0
    %705 = vmatprep.subr.mxu0 0.0
    %706 = vmatpush1.msra.mxu0 0.0
    %707 = vmatprep.subr.mxu0 0.0
    %708 = vmatpush1.msra.mxu0 0.0
    %709 = vmatprep.subr.mxu0 0.0
    %710 = vmatpush1.msra.mxu0 0.0
    %711 = vmatprep.subr.mxu0 0.0
    %712 = vmatpush1.msra.mxu0 0.0
    %713 = vmatprep.subr.mxu0 0.0
    %714 = vmatpush1.msra.mxu0 0.0
    %715 = vmatprep.subr.mxu0 0.0
    %716 = vmatpush1.msra.mxu0 0.0
    %717 = vmatprep.subr.mxu0 0.0
    %718 = vmatpush1.msra.mxu0 0.0
    %719 = vmatprep.subr.mxu0 0.0
    %720 = vmatpush1.msra.mxu0 0.0
    %721 = vmatprep.subr.mxu0 0.0
    %722 = vmatpush1.msra.mxu0 0.0
    %723 = vmatprep.subr.mxu0 0.0
    %724 = vmatpush1.msra.mxu0 0.0
    %725 = vmatprep.subr.mxu0 0.0
    %726 = vmatpush1.msra.mxu0 0.0
    %727 = vmatprep.subr.mxu0 0.0
    %728 = vmatpush1.msra.mxu0 0.0
    %729 = vmatprep.subr.mxu0 0.0
    %730 = vmatpush1.msra.mxu0 0.0
    %731 = vmatprep.subr.mxu0 0.0
    %732 = vmatpush1.msra.mxu0 0.0
    %733 = vmatprep.subr.mxu0 0.0
    %734 = vmatpush1.msra.mxu0 0.0
    %735 = vmatprep.subr.mxu0 0.0
    %736 = vmatpush1.msra.mxu0 0.0
    %737 = vmatprep.mubr.f32.mxu0 0.0
    %738 = vmatmul.mubr.f32.gmra.mrb[0].mxu0 %v669
    %v739 = vpop.f32.mrb[0].mxu0
    %v740 = vadd.f32 0.0, %v739
    %v741 = vpop.f32.mrb[0].mxu0
    %742 = vmatprep.mubr.f32.mxu0 0.0
    %743 = vmatmul.mubr.f32.gmra.mrb[0].mxu0 %v671
    %v744 = vpop.f32.mrb[0].mxu0
    %v745 = vadd.f32 0.0, %v744
    %v746 = vpop.f32.mrb[0].mxu0
    %747 = vdwg.mxu0
    %v748 = vadd.f32 %v644, %v740
    %v749 = vadd.f32 %v649, %v745
    %v750 = vld [vmem:[#allocation2 + $0x2d8] sm:$0x1]
    %v751 = vlaneseq
    %v752 = vshrl.u32 %v751, 7
    %v753 = vsub.s32 0, %v752
    %v754 = vrot.slane %v750, %v753
    %v755 = vadd.f32 %v748, %v754
    %v756 = vadd.f32 %v749, %v754
    %v757 = vmax.f32 %v755, 0.0
    %v758 = vmax.f32 %v756, 0.0
    %v759 = vld [vmem:[#allocation2 + $0x2c0] sm:$0x3f]
    %vm760 = vcmask 105472
    %v762 = vsel %vm760, %v759, 0
    %vm764 = vcmask 1044480
    %v766 = vsel %vm764, %v758, 0
    %768 = vmatprep.subr.mxu0 0.0
    %769 = vmatpush1.msra.mxu0 %v757
    %770 = vmatprep.subr.mxu0 0.0
    %771 = vmatpush1.msra.mxu0 %v766
    %772 = vmatprep.subr.mxu0 0.0
    %773 = vmatpush1.msra.mxu0 0.0
    %774 = vmatprep.subr.mxu0 0.0
    %775 = vmatpush1.msra.mxu0 0.0
    %776 = vmatprep.subr.mxu0 0.0
    %777 = vmatpush1.msra.mxu0 0.0
    %778 = vmatprep.subr.mxu0 0.0
    %779 = vmatpush1.msra.mxu0 0.0
    %780 = vmatprep.subr.mxu0 0.0
    %781 = vmatpush1.msra.mxu0 0.0
    %782 = vmatprep.subr.mxu0 0.0
    %783 = vmatpush1.msra.mxu0 0.0
    %784 = vmatprep.subr.mxu0 0.0
    %785 = vmatpush1.msra.mxu0 0.0
    %786 = vmatprep.subr.mxu0 0.0
    %787 = vmatpush1.msra.mxu0 0.0
    %788 = vmatprep.subr.mxu0 0.0
    %789 = vmatpush1.msra.mxu0 0.0
    %790 = vmatprep.subr.mxu0 0.0
    %791 = vmatpush1.msra.mxu0 0.0
    %792 = vmatprep.subr.mxu0 0.0
    %793 = vmatpush1.msra.mxu0 0.0
    %794 = vmatprep.subr.mxu0 0.0
    %795 = vmatpush1.msra.mxu0 0.0
    %796 = vmatprep.subr.mxu0 0.0
    %797 = vmatpush1.msra.mxu0 0.0
    %798 = vmatprep.subr.mxu0 0.0
    %799 = vmatpush1.msra.mxu0 0.0
    %800 = vmatprep.subr.mxu0 0.0
    %801 = vmatpush1.msra.mxu0 0.0
    %802 = vmatprep.subr.mxu0 0.0
    %803 = vmatpush1.msra.mxu0 0.0
    %804 = vmatprep.subr.mxu0 0.0
    %805 = vmatpush1.msra.mxu0 0.0
    %806 = vmatprep.subr.mxu0 0.0
    %807 = vmatpush1.msra.mxu0 0.0
    %808 = vmatprep.subr.mxu0 0.0
    %809 = vmatpush1.msra.mxu0 0.0
    %810 = vmatprep.subr.mxu0 0.0
    %811 = vmatpush1.msra.mxu0 0.0
    %812 = vmatprep.subr.mxu0 0.0
    %813 = vmatpush1.msra.mxu0 0.0
    %814 = vmatprep.subr.mxu0 0.0
    %815 = vmatpush1.msra.mxu0 0.0
    %816 = vmatprep.subr.mxu0 0.0
    %817 = vmatpush1.msra.mxu0 0.0
    %818 = vmatprep.subr.mxu0 0.0
    %819 = vmatpush1.msra.mxu0 0.0
    %820 = vmatprep.subr.mxu0 0.0
    %821 = vmatpush1.msra.mxu0 0.0
    %822 = vmatprep.subr.mxu0 0.0
    %823 = vmatpush1.msra.mxu0 0.0
    %824 = vmatprep.subr.mxu0 0.0
    %825 = vmatpush1.msra.mxu0 0.0
    %826 = vmatprep.subr.mxu0 0.0
    %827 = vmatpush1.msra.mxu0 0.0
    %828 = vmatprep.subr.mxu0 0.0
    %829 = vmatpush1.msra.mxu0 0.0
    %830 = vmatprep.subr.mxu0 0.0
    %831 = vmatpush1.msra.mxu0 0.0
    %832 = vmatprep.mubr.f32.mxu0 0.0
    %833 = vmatmul.mubr.f32.gmra.mrb[0].mxu0 %v762
    %v834 = vpop.f32.mrb[0].mxu0
    %v835 = vadd.f32 0.0, %v834
    %v836 = vpop.f32.mrb[0].mxu0
    %837 = vdwg.mxu0
    %v838 = vld [vmem:[#allocation2 + $0x210] sm:$0xff]
    %v839 = vld [vmem:[#allocation2 + $0x218] sm:$0xff]
    %v840 = vld [vmem:[#allocation2 + $0x220] sm:$0xff]
    %v841 = vld [vmem:[#allocation2 + $0x228] sm:$0xff]
    %v842 = vld [vmem:[#allocation2 + $0x230] sm:$0xff]
    %v843 = vld [vmem:[#allocation2 + $0x238] sm:$0xff]
    %v844 = vld [vmem:[#allocation2 + $0x240] sm:$0xff]
    %v845 = vld [vmem:[#allocation2 + $0x248] sm:$0xff]
    %v846 = vld [vmem:[#allocation2 + $0x250] sm:$0xff]
    %v847 = vld [vmem:[#allocation2 + $0x258] sm:$0xff]
    %v848 = vld [vmem:[#allocation2 + $0x260] sm:$0xff]
    %v849 = vld [vmem:[#allocation2 + $0x268] sm:$0xff]
    %v850 = vld [vmem:[#allocation2 + $0x270] sm:$0xff]
    %v851 = vld [vmem:[#allocation2 + $0x278] sm:$0xff]
    %v852 = vld [vmem:[#allocation2 + $0x280] sm:$0xff]
    %v853 = vld [vmem:[#allocation2 + $0x288] sm:$0xff]
    %v854 = vld [vmem:[#allocation2 + $0x290] sm:$0xff]
    %v855 = vld [vmem:[#allocation2 + $0x298] sm:$0xff]
    %v856 = vld [vmem:[#allocation2 + $0x2a0] sm:$0xff]
    %v857 = vld [vmem:[#allocation2 + $0x2a8] sm:$0xff]
    %v859 = vrot.slane %v835, 1
    %vm860 = vcmask 654336
    %v861 = vsel %vm860, %v859, 0
    %863 = vmatprep.subr.mxu0 0.0
    %864 = vmatpush1.msra.mxu0 %v848
    %865 = vmatprep.subr.mxu0 0.0
    %866 = vmatpush1.msra.mxu0 %v849
    %867 = vmatprep.subr.mxu0 0.0
    %868 = vmatpush1.msra.mxu0 %v850
    %869 = vmatprep.subr.mxu0 0.0
    %870 = vmatpush1.msra.mxu0 %v851
    %871 = vmatprep.subr.mxu0 0.0
    %872 = vmatpush1.msra.mxu0 %v852
    %873 = vmatprep.subr.mxu0 0.0
    %874 = vmatpush1.msra.mxu0 %v853
    %875 = vmatprep.subr.mxu0 0.0
    %876 = vmatpush1.msra.mxu0 %v854
    %877 = vmatprep.subr.mxu0 0.0
    %878 = vmatpush1.msra.mxu0 %v855
    %879 = vmatprep.subr.mxu0 0.0
    %880 = vmatpush1.msra.mxu0 %v856
    %881 = vmatprep.subr.mxu0 0.0
    %882 = vmatpush1.msra.mxu0 %v857
    %883 = vmatprep.subr.mxu0 0.0
    %884 = vmatpush1.msra.mxu0 0.0
    %885 = vmatprep.subr.mxu0 0.0
    %886 = vmatpush1.msra.mxu0 0.0
    %887 = vmatprep.subr.mxu0 0.0
    %888 = vmatpush1.msra.mxu0 0.0
    %889 = vmatprep.subr.mxu0 0.0
    %890 = vmatpush1.msra.mxu0 0.0
    %891 = vmatprep.subr.mxu0 0.0
    %892 = vmatpush1.msra.mxu0 0.0
    %893 = vmatprep.subr.mxu0 0.0
    %894 = vmatpush1.msra.mxu0 0.0
    %895 = vmatprep.subr.mxu0 0.0
    %896 = vmatpush1.msra.mxu0 0.0
    %897 = vmatprep.subr.mxu0 0.0
    %898 = vmatpush1.msra.mxu0 0.0
    %899 = vmatprep.subr.mxu0 0.0
    %900 = vmatpush1.msra.mxu0 0.0
    %901 = vmatprep.subr.mxu0 0.0
    %902 = vmatpush1.msra.mxu0 0.0
    %903 = vmatprep.subr.mxu0 0.0
    %904 = vmatpush1.msra.mxu0 0.0
    %905 = vmatprep.subr.mxu0 0.0
    %906 = vmatpush1.msra.mxu0 0.0
    %907 = vmatprep.subr.mxu0 0.0
    %908 = vmatpush1.msra.mxu0 0.0
    %909 = vmatprep.subr.mxu0 0.0
    %910 = vmatpush1.msra.mxu0 0.0
    %911 = vmatprep.subr.mxu0 0.0
    %912 = vmatpush1.msra.mxu0 0.0
    %913 = vmatprep.subr.mxu0 0.0
    %914 = vmatpush1.msra.mxu0 0.0
    %915 = vmatprep.subr.mxu0 0.0
    %916 = vmatpush1.msra.mxu0 0.0
    %917 = vmatprep.subr.mxu0 0.0
    %918 = vmatpush1.msra.mxu0 0.0
    %919 = vmatprep.subr.mxu0 0.0
    %920 = vmatpush1.msra.mxu0 0.0
    %921 = vmatprep.subr.mxu0 0.0
    %922 = vmatpush1.msra.mxu0 0.0
    %923 = vmatprep.subr.mxu0 0.0
    %924 = vmatpush1.msra.mxu0 0.0
    %925 = vmatprep.subr.mxu0 0.0
    %926 = vmatpush1.msra.mxu0 0.0
    %927 = vmatprep.mubr.f32.mxu0 0.0
    %928 = vmatmul.mubr.f32.gmra.mrb[0].mxu0 %v861
    %v929 = vpop.f32.mrb[0].mxu0
    %v930 = vadd.f32 0.0, %v929
    %v931 = vpop.f32.mrb[0].mxu0
    %932 = vdwg.mxu0
    %v933 = vsel %vm860, %v835, 0
    %935 = vmatprep.subr.mxu0 0.0
    %936 = vmatpush1.msra.mxu0 %v838
    %937 = vmatprep.subr.mxu0 0.0
    %938 = vmatpush1.msra.mxu0 %v839
    %939 = vmatprep.subr.mxu0 0.0
    %940 = vmatpush1.msra.mxu0 %v840
    %941 = vmatprep.subr.mxu0 0.0
    %942 = vmatpush1.msra.mxu0 %v841
    %943 = vmatprep.subr.mxu0 0.0
    %944 = vmatpush1.msra.mxu0 %v842
    %945 = vmatprep.subr.mxu0 0.0
    %946 = vmatpush1.msra.mxu0 %v843
    %947 = vmatprep.subr.mxu0 0.0
    %948 = vmatpush1.msra.mxu0 %v844
    %949 = vmatprep.subr.mxu0 0.0
    %950 = vmatpush1.msra.mxu0 %v845
    %951 = vmatprep.subr.mxu0 0.0
    %952 = vmatpush1.msra.mxu0 %v846
    %953 = vmatprep.subr.mxu0 0.0
    %954 = vmatpush1.msra.mxu0 %v847
    %955 = vmatprep.subr.mxu0 0.0
    %956 = vmatpush1.msra.mxu0 0.0
    %957 = vmatprep.subr.mxu0 0.0
    %958 = vmatpush1.msra.mxu0 0.0
    %959 = vmatprep.subr.mxu0 0.0
    %960 = vmatpush1.msra.mxu0 0.0
    %961 = vmatprep.subr.mxu0 0.0
    %962 = vmatpush1.msra.mxu0 0.0
    %963 = vmatprep.subr.mxu0 0.0
    %964 = vmatpush1.msra.mxu0 0.0
    %965 = vmatprep.subr.mxu0 0.0
    %966 = vmatpush1.msra.mxu0 0.0
    %967 = vmatprep.subr.mxu0 0.0
    %968 = vmatpush1.msra.mxu0 0.0
    %969 = vmatprep.subr.mxu0 0.0
    %970 = vmatpush1.msra.mxu0 0.0
    %971 = vmatprep.subr.mxu0 0.0
    %972 = vmatpush1.msra.mxu0 0.0
    %973 = vmatprep.subr.mxu0 0.0
    %974 = vmatpush1.msra.mxu0 0.0
    %975 = vmatprep.subr.mxu0 0.0
    %976 = vmatpush1.msra.mxu0 0.0
    %977 = vmatprep.subr.mxu0 0.0
    %978 = vmatpush1.msra.mxu0 0.0
    %979 = vmatprep.subr.mxu0 0.0
    %980 = vmatpush1.msra.mxu0 0.0
    %981 = vmatprep.subr.mxu0 0.0
    %982 = vmatpush1.msra.mxu0 0.0
    %983 = vmatprep.subr.mxu0 0.0
    %984 = vmatpush1.msra.mxu0 0.0
    %985 = vmatprep.subr.mxu0 0.0
    %986 = vmatpush1.msra.mxu0 0.0
    %987 = vmatprep.subr.mxu0 0.0
    %988 = vmatpush1.msra.mxu0 0.0
    %989 = vmatprep.subr.mxu0 0.0
    %990 = vmatpush1.msra.mxu0 0.0
    %991 = vmatprep.subr.mxu0 0.0
    %992 = vmatpush1.msra.mxu0 0.0
    %993 = vmatprep.subr.mxu0 0.0
    %994 = vmatpush1.msra.mxu0 0.0
    %995 = vmatprep.subr.mxu0 0.0
    %996 = vmatpush1.msra.mxu0 0.0
    %997 = vmatprep.subr.mxu0 0.0
    %998 = vmatpush1.msra.mxu0 0.0
    %999 = vmatprep.mubr.f32.mxu0 0.0
    %1000 = vmatmul.mubr.f32.gmra.mrb[0].mxu0 %v933
    %v1001 = vpop.f32.mrb[0].mxu0
    %v1002 = vadd.f32 %v930, %v1001
    %v1003 = vpop.f32.mrb[0].mxu0
    %1004 = vdwg.mxu0
    %v1005 = vld [vmem:[#allocation2 + $0x2e0] sm:$0x1]
    %v1006 = vlaneseq
    %v1007 = vshrl.u32 %v1006, 7
    %v1008 = vsub.s32 0, %v1007
    %v1009 = vrot.slane %v1005, %v1008
    %v1010 = vadd.f32 %v1002, %v1009
    %v1011 = vmax.f32 %v1010, 0.0
    %v1012 = vld [vmem:[#allocation2 + $0x2c8] sm:$0x3]
    %vm1013 = vcmask 39936
    %v1015 = vsel %vm1013, %v1012, 0
    %v1018 = vsel %vm764, %v1011, 0
    %1020 = vmatprep.subr.mxu0 0.0
    %1021 = vmatpush1.msra.mxu0 %v1018
    %1022 = vmatprep.subr.mxu0 0.0
    %1023 = vmatpush1.msra.mxu0 0.0
    %1024 = vmatprep.subr.mxu0 0.0
    %1025 = vmatpush1.msra.mxu0 0.0
    %1026 = vmatprep.subr.mxu0 0.0
    %1027 = vmatpush1.msra.mxu0 0.0
    %1028 = vmatprep.subr.mxu0 0.0
    %1029 = vmatpush1.msra.mxu0 0.0
    %1030 = vmatprep.subr.mxu0 0.0
    %1031 = vmatpush1.msra.mxu0 0.0
    %1032 = vmatprep.subr.mxu0 0.0
    %1033 = vmatpush1.msra.mxu0 0.0
    %1034 = vmatprep.subr.mxu0 0.0
    %1035 = vmatpush1.msra.mxu0 0.0
    %1036 = vmatprep.subr.mxu0 0.0
    %1037 = vmatpush1.msra.mxu0 0.0
    %1038 = vmatprep.subr.mxu0 0.0
    %1039 = vmatpush1.msra.mxu0 0.0
    %1040 = vmatprep.subr.mxu0 0.0
    %1041 = vmatpush1.msra.mxu0 0.0
    %1042 = vmatprep.subr.mxu0 0.0
    %1043 = vmatpush1.msra.mxu0 0.0
    %1044 = vmatprep.subr.mxu0 0.0
    %1045 = vmatpush1.msra.mxu0 0.0
    %1046 = vmatprep.subr.mxu0 0.0
    %1047 = vmatpush1.msra.mxu0 0.0
    %1048 = vmatprep.subr.mxu0 0.0
    %1049 = vmatpush1.msra.mxu0 0.0
    %1050 = vmatprep.subr.mxu0 0.0
    %1051 = vmatpush1.msra.mxu0 0.0
    %1052 = vmatprep.subr.mxu0 0.0
    %1053 = vmatpush1.msra.mxu0 0.0
    %1054 = vmatprep.subr.mxu0 0.0
    %1055 = vmatpush1.msra.mxu0 0.0
    %1056 = vmatprep.subr.mxu0 0.0
    %1057 = vmatpush1.msra.mxu0 0.0
    %1058 = vmatprep.subr.mxu0 0.0
    %1059 = vmatpush1.msra.mxu0 0.0
    %1060 = vmatprep.subr.mxu0 0.0
    %1061 = vmatpush1.msra.mxu0 0.0
    %1062 = vmatprep.subr.mxu0 0.0
    %1063 = vmatpush1.msra.mxu0 0.0
    %1064 = vmatprep.subr.mxu0 0.0
    %1065 = vmatpush1.msra.mxu0 0.0
    %1066 = vmatprep.subr.mxu0 0.0
    %1067 = vmatpush1.msra.mxu0 0.0
    %1068 = vmatprep.subr.mxu0 0.0
    %1069 = vmatpush1.msra.mxu0 0.0
    %1070 = vmatprep.subr.mxu0 0.0
    %1071 = vmatpush1.msra.mxu0 0.0
    %1072 = vmatprep.subr.mxu0 0.0
    %1073 = vmatpush1.msra.mxu0 0.0
    %1074 = vmatprep.subr.mxu0 0.0
    %1075 = vmatpush1.msra.mxu0 0.0
    %1076 = vmatprep.subr.mxu0 0.0
    %1077 = vmatpush1.msra.mxu0 0.0
    %1078 = vmatprep.subr.mxu0 0.0
    %1079 = vmatpush1.msra.mxu0 0.0
    %1080 = vmatprep.subr.mxu0 0.0
    %1081 = vmatpush1.msra.mxu0 0.0
    %1082 = vmatprep.subr.mxu0 0.0
    %1083 = vmatpush1.msra.mxu0 0.0
    %1084 = vmatprep.mubr.f32.mxu0 0.0
    %1085 = vmatmul.mubr.f32.gmra.mrb[0].mxu0 %v1015
    %v1086 = vpop.f32.mrb[0].mxu0
    %v1087 = vadd.f32 0.0, %v1086
    %v1088 = vpop.f32.mrb[0].mxu0
    %1089 = vdwg.mxu0
    %v1090 = vld [vmem:[#allocation2 + $0x2e8] sm:$0xff]
    %v1091 = vld [vmem:[#allocation2 + $0x2f0] sm:$0xff]
    %v1092 = vld [vmem:[#allocation2 + $0x2f8] sm:$0xff]
    %v1093 = vld [vmem:[#allocation2 + $0x300] sm:$0xff]
    %v1094 = vld [vmem:[#allocation2 + $0x308] sm:$0x1]
    %v1095 = vlaneseq
    %v1096 = vshrl.u32 %v1095, 7
    %v1097 = vsub.s32 0, %v1096
    %v1098 = vrot.slane %v1094, %v1097
    %vm1099 = vcmask 261120
    %v1101 = vsel %vm1099, %v1087, 0
    %1103 = vmatprep.subr.mxu0 0.0
    %1104 = vmatpush1.msra.mxu0 %v1090
    %1105 = vmatprep.subr.mxu0 0.0
    %1106 = vmatpush1.msra.mxu0 %v1091
    %1107 = vmatprep.subr.mxu0 0.0
    %1108 = vmatpush1.msra.mxu0 %v1092
    %1109 = vmatprep.subr.mxu0 0.0
    %1110 = vmatpush1.msra.mxu0 %v1093
    %1111 = vmatprep.subr.mxu0 0.0
    %1112 = vmatpush1.msra.mxu0 0.0
    %1113 = vmatprep.subr.mxu0 0.0
    %1114 = vmatpush1.msra.mxu0 0.0
    %1115 = vmatprep.subr.mxu0 0.0
    %1116 = vmatpush1.msra.mxu0 0.0
    %1117 = vmatprep.subr.mxu0 0.0
    %1118 = vmatpush1.msra.mxu0 0.0
    %1119 = vmatprep.subr.mxu0 0.0
    %1120 = vmatpush1.msra.mxu0 0.0
    %1121 = vmatprep.subr.mxu0 0.0
    %1122 = vmatpush1.msra.mxu0 0.0
    %1123 = vmatprep.subr.mxu0 0.0
    %1124 = vmatpush1.msra.mxu0 0.0
    %1125 = vmatprep.subr.mxu0 0.0
    %1126 = vmatpush1.msra.mxu0 0.0
    %1127 = vmatprep.subr.mxu0 0.0
    %1128 = vmatpush1.msra.mxu0 0.0
    %1129 = vmatprep.subr.mxu0 0.0
    %1130 = vmatpush1.msra.mxu0 0.0
    %1131 = vmatprep.subr.mxu0 0.0
    %1132 = vmatpush1.msra.mxu0 0.0
    %1133 = vmatprep.subr.mxu0 0.0
    %1134 = vmatpush1.msra.mxu0 0.0
    %1135 = vmatprep.subr.mxu0 0.0
    %1136 = vmatpush1.msra.mxu0 0.0
    %1137 = vmatprep.subr.mxu0 0.0
    %1138 = vmatpush1.msra.mxu0 0.0
    %1139 = vmatprep.subr.mxu0 0.0
    %1140 = vmatpush1.msra.mxu0 0.0
    %1141 = vmatprep.subr.mxu0 0.0
    %1142 = vmatpush1.msra.mxu0 0.0
    %1143 = vmatprep.subr.mxu0 0.0
    %1144 = vmatpush1.msra.mxu0 0.0
    %1145 = vmatprep.subr.mxu0 0.0
    %1146 = vmatpush1.msra.mxu0 0.0
    %1147 = vmatprep.subr.mxu0 0.0
    %1148 = vmatpush1.msra.mxu0 0.0
    %1149 = vmatprep.subr.mxu0 0.0
    %1150 = vmatpush1.msra.mxu0 0.0
    %1151 = vmatprep.subr.mxu0 0.0
    %1152 = vmatpush1.msra.mxu0 0.0
    %1153 = vmatprep.subr.mxu0 0.0
    %1154 = vmatpush1.msra.mxu0 0.0
    %1155 = vmatprep.subr.mxu0 0.0
    %1156 = vmatpush1.msra.mxu0 0.0
    %1157 = vmatprep.subr.mxu0 0.0
    %1158 = vmatpush1.msra.mxu0 0.0
    %1159 = vmatprep.subr.mxu0 0.0
    %1160 = vmatpush1.msra.mxu0 0.0
    %1161 = vmatprep.subr.mxu0 0.0
    %1162 = vmatpush1.msra.mxu0 0.0
    %1163 = vmatprep.subr.mxu0 0.0
    %1164 = vmatpush1.msra.mxu0 0.0
    %1165 = vmatprep.subr.mxu0 0.0
    %1166 = vmatpush1.msra.mxu0 0.0
    %1167 = vmatprep.mubr.f32.mxu0 0.0
    %1168 = vmatmul.mubr.f32.gmra.mrb[0].mxu0 %v1101
    %v1169 = vpop.f32.mrb[0].mxu0
    %v1170 = vadd.f32 %v1098, %v1169
    %v1171 = vpop.f32.mrb[0].mxu0
    %1172 = vdwg.mxu0
    %vm1173 = vcmask 9216
    %v1174 = vsel %vm1173, %v1170, -inf
    %1175 = vmax.xlane.f32.xlu0 %v1174
    %v1176 = vpop.xlane.xlu0 %1175
    %v1177 = vsub.f32 %v1170, %v1176
    %v1178 = vmul.f32 %v1177, 1.442695
    %v1179 = vpow.pop %v1178
    %v1180 = vsel %vm1173, %v1179, 0.0
    %1181 = vadd.xlane.f32.xlu0 %v1180
    %v1182 = vpop.xlane.xlu0 %1181
    %v1183 = vlog2.pop %v1182
    %v1184 = vmul.f32 %v1183, 0.6931472
    %v1185 = vsub.f32 %v1177, %v1184
    %1186 = vst.msk [vmem:[#allocation5] sm:$0x3] %vm1173, %v1185
    // Predicated region
    $region14: #{forward.1} parent=1 // pred_check
      _
    $region15: #{forward.1} parent=1 // pred_check_branch
      %1188 = sbr.rel (0) target = $region17
    $region16: #{forward.1} parent=1 // pred_region
      %s1190 = ssub.s32 32, 32
      %1191 = vsyncadd [#allocation4], %s1190
      %s1193 = sshll.u32 [#allocation5], 4
      %s1194 = int_to_ptr.vmem [resolvable:$true] %s1193
      %1196 = dma.vmem_to_hbm [thread:$0]  %s1194, 32, %s2, [#allocation4]
    $region17: #{forward.1} parent=1 // pred_fallthru
      _
    // Predicated region
    $region18: #{forward.1} parent=1 // pred_check
      _
    $region19: #{forward.1} parent=1 // pred_check_branch
      %1198 = sbr.rel (0) target = $region21
    $region20: #{forward.1} parent=1 // pred_region
      %1199 = dma.done [#allocation4], 32
    $region21: #{forward.1} parent=1 // pred_fallthru
      _
    %1200 = vsyncpa [#allocation3], 1
    %1201 = vsyncpa [#allocation4], 1

</llo_original>
